<compile_context>
chip_gen: v6e
topology: v6e:2x2x1
jax: 0.10.0
libtpu: 0.0.40
codegen_flags: <defaults>
</compile_context>

<pallas_src>
import functools

import jax
import jax.numpy as jnp
from jax.experimental import pallas as pl
from jax.experimental.pallas import tpu as pltpu

_IN = 784            # 1*28*28
_H1 = 128            # Linear(784, 128) — already lane-dense
_H2_PAD = 128        # Linear(128, 64)  -> padded to 128
_OUT_PAD = 128       # Linear(64, 10)   -> padded to 128
_NUM_CLASSES = 10
_MAX_TILE_B = 256    # matches 256-wide MXU M dim on v6e/v7x; < 2 MiB VMEM/tile
_SUBLANE = 16        # bf16 sublane packing


def _round_up(x: int, m: int) -> int:
    return ((x + m - 1) // m) * m


def _fused_mlp_kernel(x_ref, w1_ref, b1_ref, w2_ref, b2_ref, w3_ref, b3_ref, o_ref):
    """Whole padded MLP for one batch tile. Weights are VMEM-resident.

    x_ref : (TILE_B, 784) bf16      w1_ref: (784, 128) bf16   b1_ref: (1, 128) f32
    w2_ref: (128, 128)   bf16       b2_ref: (1, 128)  f32     (cols >= 64 zero)
    w3_ref: (128, 128)   bf16       b3_ref: (1, 128)  f32     (rows>=64, cols>=10 zero)
    o_ref : (TILE_B, 128) f32       (cols >= 10 zero; sliced off outside)
    """
    h = jnp.dot(x_ref[...], w1_ref[...], preferred_element_type=jnp.float32)
    h = jnp.maximum(h + b1_ref[...], 0.0).astype(w2_ref.dtype)

    h = jnp.dot(h, w2_ref[...], preferred_element_type=jnp.float32)
    h = jnp.maximum(h + b2_ref[...], 0.0).astype(w3_ref.dtype)

    y = jnp.dot(h, w3_ref[...], preferred_element_type=jnp.float32)
    o_ref[...] = (y + b3_ref[...]).astype(o_ref.dtype)


def _fused_mlp(x2d, kparams, tile_b: int):
    """Batch-tiled pallas_call. x2d: (B_padded, 784) bf16, B_padded % tile_b == 0."""
    b_padded = x2d.shape[0]
    w1t, b1, w2t, b2, w3t, b3 = kparams

    def _resident(shape):
        # Full-shape block, constant index -> DMA'd once, stays in VMEM.
        return pl.BlockSpec(shape, lambda i: (0, 0))

    return pl.pallas_call(
        _fused_mlp_kernel,
        out_shape=jax.ShapeDtypeStruct((b_padded, _OUT_PAD), jnp.float32),
        grid=(b_padded // tile_b,),
        in_specs=[
            pl.BlockSpec((tile_b, _IN), lambda i: (i, 0)),   # x: tiled over batch
            _resident(w1t.shape), _resident(b1.shape),
            _resident(w2t.shape), _resident(b2.shape),
            _resident(w3t.shape), _resident(b3.shape),
        ],
        out_specs=pl.BlockSpec((tile_b, _OUT_PAD), lambda i: (i, 0)),
        compiler_params=pltpu.CompilerParams(
            dimension_semantics=("parallel",)),       # megacore split on v7x
    )(x2d, w1t, b1, w2t, b2, w3t, b3)


def init_linear_params(key, out_features: int, in_features: int):
    """Deterministic PyTorch-default-style init: U(-1/sqrt(fan_in), 1/sqrt(fan_in))."""
    kw, kb = jax.random.split(key)
    bound = 1.0 / jnp.sqrt(jnp.float32(in_features))
    w = jax.random.uniform(
        kw, (out_features, in_features), jnp.float32, minval=-bound, maxval=bound
    )
    b = jax.random.uniform(
        kb, (out_features,), jnp.float32, minval=-bound, maxval=bound
    )
    return w, b


def prepare_kernel_params(params):
    """One-time prep: transpose weights to (K, N), pad to lane-dense 128,
    cast weights to bf16 (f32 biases, added in the f32 accumulator)."""
    (w1, b1), (w2, b2), (w3, b3) = params

    # Layer 1: (128, 784) -> (784, 128), already lane-dense.
    w1t = jnp.transpose(w1).astype(jnp.bfloat16)                     # (784, 128)
    b1p = b1.reshape(1, _H1).astype(jnp.float32)                     # (1, 128)

    # Layer 2: (64, 128) -> (128, 64) -> pad cols 64 -> 128.
    w2t = jnp.transpose(w2)                                          # (128, 64)
    w2t = jnp.pad(w2t, ((0, 0), (0, _H2_PAD - w2t.shape[1])))
    w2t = w2t.astype(jnp.bfloat16)                                   # (128, 128)
    b2p = jnp.pad(b2, (0, _H2_PAD - b2.shape[0])).reshape(1, _H2_PAD)

    # Layer 3: (10, 64) -> (64, 10) -> pad rows 64->128, cols 10->128.
    w3t = jnp.transpose(w3)                                          # (64, 10)
    w3t = jnp.pad(
        w3t, ((0, _H2_PAD - w3t.shape[0]), (0, _OUT_PAD - w3t.shape[1]))
    ).astype(jnp.bfloat16)                                           # (128, 128)
    b3p = jnp.pad(b3, (0, _OUT_PAD - b3.shape[0])).reshape(1, _OUT_PAD)

    return (w1t, b1p, w2t, b2p, w3t, b3p)


@functools.partial(jax.jit, static_argnames=("tile_b",))
def _forward_impl(x_nchw, kernel_params, tile_b: int):
    B = x_nchw.shape[0]
    # nn.Flatten(): (B, C, H, W) -> (B, C*H*W), row-major (matches torch).
    h = x_nchw.reshape(B, -1).astype(jnp.bfloat16)
    b_padded = _round_up(B, tile_b)
    if b_padded != B:
        h = jnp.pad(h, ((0, b_padded - B), (0, 0)))   # zero rows; sliced off below
    logits_padded = _fused_mlp(h, kernel_params, tile_b)
    # Slice off batch padding and class padding (fuses into the jit; for large
    # training batches, consume logits_padded directly to skip this copy).
    return logits_padded[:B, :_NUM_CLASSES]


def mnist_model_forward(x_nchw, kernel_params):
    """Forward pass of MNIST_Model(nn.Sequential(Flatten, Linear, ReLU, ...))."""
    B = x_nchw.shape[0]
    tile_b = min(_MAX_TILE_B, _round_up(max(B, 1), _SUBLANE))
    return _forward_impl(x_nchw, kernel_params, tile_b)


def reference_forward(x_nchw, params):
    """Pure-JAX f32 reference (original PyTorch layout)."""
    B = x_nchw.shape[0]
    h = x_nchw.reshape(B, -1)
    (w1, b1), (w2, b2), (w3, b3) = params
    h = jnp.maximum(h @ w1.T + b1, 0.0)
    h = jnp.maximum(h @ w2.T + b2, 0.0)
    return h @ w3.T + b3


if __name__ == "__main__":
    key = jax.random.PRNGKey(0)
    k_x, k1, k2, k3 = jax.random.split(key, 4)

    # Small MNIST-shaped input: batch=2, NCHW (2, 1, 28, 28)
    x = jax.random.normal(k_x, (2, 1, 28, 28), dtype=jnp.float32)

    params = (
        init_linear_params(k1, 128, 784),
        init_linear_params(k2, 64, 128),
        init_linear_params(k3, 10, 64),
    )
    kernel_params = prepare_kernel_params(params)

    out = mnist_model_forward(x, kernel_params)
    out = jax.block_until_ready(out)

    ref = reference_forward(x, params)
    assert out.shape == (2, _NUM_CLASSES), out.shape
    # bf16 matmul inputs with f32 accumulation vs f32 reference -> looser tol.
    assert jnp.allclose(out, ref, atol=5e-2, rtol=5e-2), "mismatch vs reference"

    print("KERNEL_OK")
</pallas_src>

<mosaic_0001>
module attributes {stable_mosaic.version = 11 : i64} {
  func.func @_fused_mlp_kernel(%arg0: i32, %arg1: memref<16x784xbf16, #tpu.memory_space<vmem>>, %arg2: memref<784x128xbf16, #tpu.memory_space<vmem>>, %arg3: memref<1x128xf32, #tpu.memory_space<vmem>>, %arg4: memref<128x128xbf16, #tpu.memory_space<vmem>>, %arg5: memref<1x128xf32, #tpu.memory_space<vmem>>, %arg6: memref<128x128xbf16, #tpu.memory_space<vmem>>, %arg7: memref<1x128xf32, #tpu.memory_space<vmem>>, %arg8: memref<16x128xf32, #tpu.memory_space<vmem>>) attributes {dimension_semantics = [#tpu.dimension_semantics<parallel>], iteration_bounds = array<i64: 1>, scalar_prefetch = 0 : i64, scratch_operands = 0 : i64, tpu.core_type = #tpu.core_type<tc>, window_params = [{transform_indices = @transform_0, window_bounds = array<i64: 16, 784>}, {pipeline_mode = #tpu.pipeline_mode<synchronous>, transform_indices = @transform_1, window_bounds = array<i64: 784, 128>}, {pipeline_mode = #tpu.pipeline_mode<synchronous>, transform_indices = @transform_2, window_bounds = array<i64: 1, 128>}, {pipeline_mode = #tpu.pipeline_mode<synchronous>, transform_indices = @transform_3, window_bounds = array<i64: 128, 128>}, {pipeline_mode = #tpu.pipeline_mode<synchronous>, transform_indices = @transform_4, window_bounds = array<i64: 1, 128>}, {pipeline_mode = #tpu.pipeline_mode<synchronous>, transform_indices = @transform_5, window_bounds = array<i64: 128, 128>}, {pipeline_mode = #tpu.pipeline_mode<synchronous>, transform_indices = @transform_6, window_bounds = array<i64: 1, 128>}, {transform_indices = @transform_7, window_bounds = array<i64: 16, 128>}]} {
    %c0 = arith.constant 0 : index
    %c0_0 = arith.constant 0 : index
    %0 = vector.load %arg1[%c0, %c0_0] : memref<16x784xbf16, #tpu.memory_space<vmem>>, vector<16x784xbf16>
    %c0_1 = arith.constant 0 : index
    %c0_2 = arith.constant 0 : index
    %1 = vector.load %arg2[%c0_1, %c0_2] : memref<784x128xbf16, #tpu.memory_space<vmem>>, vector<784x128xbf16>
    %cst = arith.constant dense<0.000000e+00> : vector<16x128xf32>
    %2 = tpu.matmul %0, %1, %cst {dimension_numbers = #tpu.dot_dimension_numbers<[1], [0], [0], [1], [0, 0, 1, 1], [], []>} : vector<16x784xbf16>, vector<784x128xbf16>, vector<16x128xf32> -> vector<16x128xf32>
    %c0_3 = arith.constant 0 : index
    %c0_4 = arith.constant 0 : index
    %3 = vector.load %arg3[%c0_3, %c0_4] : memref<1x128xf32, #tpu.memory_space<vmem>>, vector<1x128xf32>
    %4 = vector.broadcast %3 : vector<1x128xf32> to vector<16x128xf32>
    %5 = arith.addf %2, %4 : vector<16x128xf32>
    %cst_5 = arith.constant 0.000000e+00 : f32
    %6 = vector.broadcast %cst_5 : f32 to vector<16x128xf32>
    %7 = arith.maximumf %5, %6 : vector<16x128xf32>
    %8 = arith.truncf %7 : vector<16x128xf32> to vector<16x128xbf16>
    %c0_6 = arith.constant 0 : index
    %c0_7 = arith.constant 0 : index
    %9 = vector.load %arg4[%c0_6, %c0_7] : memref<128x128xbf16, #tpu.memory_space<vmem>>, vector<128x128xbf16>
    %cst_8 = arith.constant dense<0.000000e+00> : vector<16x128xf32>
    %10 = tpu.matmul %8, %9, %cst_8 {dimension_numbers = #tpu.dot_dimension_numbers<[1], [0], [0], [1], [0, 0, 1, 1], [], []>} : vector<16x128xbf16>, vector<128x128xbf16>, vector<16x128xf32> -> vector<16x128xf32>
    %c0_9 = arith.constant 0 : index
    %c0_10 = arith.constant 0 : index
    %11 = vector.load %arg5[%c0_9, %c0_10] : memref<1x128xf32, #tpu.memory_space<vmem>>, vector<1x128xf32>
    %12 = vector.broadcast %11 : vector<1x128xf32> to vector<16x128xf32>
    %13 = arith.addf %10, %12 : vector<16x128xf32>
    %cst_11 = arith.constant 0.000000e+00 : f32
    %14 = vector.broadcast %cst_11 : f32 to vector<16x128xf32>
    %15 = arith.maximumf %13, %14 : vector<16x128xf32>
    %16 = arith.truncf %15 : vector<16x128xf32> to vector<16x128xbf16>
    %c0_12 = arith.constant 0 : index
    %c0_13 = arith.constant 0 : index
    %17 = vector.load %arg6[%c0_12, %c0_13] : memref<128x128xbf16, #tpu.memory_space<vmem>>, vector<128x128xbf16>
    %cst_14 = arith.constant dense<0.000000e+00> : vector<16x128xf32>
    %18 = tpu.matmul %16, %17, %cst_14 {dimension_numbers = #tpu.dot_dimension_numbers<[1], [0], [0], [1], [0, 0, 1, 1], [], []>} : vector<16x128xbf16>, vector<128x128xbf16>, vector<16x128xf32> -> vector<16x128xf32>
    %c0_15 = arith.constant 0 : index
    %c0_16 = arith.constant 0 : index
    %19 = vector.load %arg7[%c0_15, %c0_16] : memref<1x128xf32, #tpu.memory_space<vmem>>, vector<1x128xf32>
    %20 = vector.broadcast %19 : vector<1x128xf32> to vector<16x128xf32>
    %21 = arith.addf %18, %20 : vector<16x128xf32>
    %c0_17 = arith.constant 0 : index
    %c0_18 = arith.constant 0 : index
    %22 = vector.load %arg8[%c0_17, %c0_18] : memref<16x128xf32, #tpu.memory_space<vmem>>, vector<16x128xf32>
    tpu.vector_store %arg8[%c0_17, %c0_18], %21 {strides = array<i32>} : memref<16x128xf32, #tpu.memory_space<vmem>>, vector<16x128xf32>,
    return
  }
  func.func @transform_0(%arg0: i32) -> (i32, i32) {
    %c0_i32 = arith.constant 0 : i32
    %c0_i32_0 = arith.constant 0 : i32
    return %arg0, %c0_i32 : i32, i32
  }
  func.func @transform_1(%arg0: i32) -> (i32, i32) {
    %c0_i32 = arith.constant 0 : i32
    %c0_i32_0 = arith.constant 0 : i32
    %c0_i32_1 = arith.constant 0 : i32
    return %c0_i32, %c0_i32_0 : i32, i32
  }
  func.func @transform_2(%arg0: i32) -> (i32, i32) {
    %c0_i32 = arith.constant 0 : i32
    %c0_i32_0 = arith.constant 0 : i32
    %c0_i32_1 = arith.constant 0 : i32
    return %c0_i32, %c0_i32_0 : i32, i32
  }
  func.func @transform_3(%arg0: i32) -> (i32, i32) {
    %c0_i32 = arith.constant 0 : i32
    %c0_i32_0 = arith.constant 0 : i32
    %c0_i32_1 = arith.constant 0 : i32
    return %c0_i32, %c0_i32_0 : i32, i32
  }
  func.func @transform_4(%arg0: i32) -> (i32, i32) {
    %c0_i32 = arith.constant 0 : i32
    %c0_i32_0 = arith.constant 0 : i32
    %c0_i32_1 = arith.constant 0 : i32
    return %c0_i32, %c0_i32_0 : i32, i32
  }
  func.func @transform_5(%arg0: i32) -> (i32, i32) {
    %c0_i32 = arith.constant 0 : i32
    %c0_i32_0 = arith.constant 0 : i32
    %c0_i32_1 = arith.constant 0 : i32
    return %c0_i32, %c0_i32_0 : i32, i32
  }
  func.func @transform_6(%arg0: i32) -> (i32, i32) {
    %c0_i32 = arith.constant 0 : i32
    %c0_i32_0 = arith.constant 0 : i32
    %c0_i32_1 = arith.constant 0 : i32
    return %c0_i32, %c0_i32_0 : i32, i32
  }
  func.func @transform_7(%arg0: i32) -> (i32, i32) {
    %c0_i32 = arith.constant 0 : i32
    %c0_i32_0 = arith.constant 0 : i32
    return %arg0, %c0_i32 : i32, i32
  }
}

</mosaic_0001>

<llo_original>
// kernel: _forward_impl.1
$region0: #{_forward_impl.1}
  #allocation0 [shape = 'u32[]', space=smem, size = 0x4, offset = 0x4, fixed_abs, tag = 'smem constant byte address 0x4 - core index']
  #allocation1 [shape = 'u32[144,128]{1,0:T(1,128)}', space=vmem, size = 0x12000, scoped, tag = 'internal scratch']
  %s0 = inlined_call_operand.vmem [shape: bf16[16,784], index: 0, kind: input, shape index: {}]
  %s1 = inlined_call_operand.hbm [shape: bf16[784,128], index: 1, kind: input, shape index: {}]
  %s2 = inlined_call_operand.vmem [shape: f32[1,128], index: 2, kind: input, shape index: {}]
  %s3 = inlined_call_operand.vmem [shape: bf16[128,128], index: 3, kind: input, shape index: {}]
  %s4 = inlined_call_operand.vmem [shape: f32[1,128], index: 4, kind: input, shape index: {}]
  %s5 = inlined_call_operand.vmem [shape: bf16[128,128], index: 5, kind: input, shape index: {}]
  %s6 = inlined_call_operand.vmem [shape: f32[1,128], index: 6, kind: input, shape index: {}]
  %s7 = inlined_call_operand.vmem [shape: f32[16,128], index: 7, kind: output, shape index: {}]
  %s8 = sld [smem:[#allocation0]]
  $region42: #{_forward_impl.1} parent=0
    _
  %s10 = ssub.s32 1, %s8
  %s11 = scalar_select 0, %s10, %s8
  $region1: #{_forward_impl.1} parent=0
    #allocation2 [shape = 'u8[200704]{0}', space=vmem, size = 0x31000, scoped, tag = 'input window, operand 1, single buffered']
    #allocation3 [shape = 's32[1]{0}', space=sflag, size = 0x4, scoped, tag = 'scoped memory for _forward_impl.1']
    %12 = vsyncpa [#allocation3], 0
    // Predicated region
    $region2: #{_forward_impl.1} parent=1 // pred_check
      _
    $region3: #{_forward_impl.1} parent=1 // pred_check_branch
      %14 = sbr.rel (0) target = $region5
    $region4: #{_forward_impl.1} parent=1 // pred_region
      _
    $region5: #{_forward_impl.1} parent=1 // pred_fallthru
      _
    // Predicated region
    $region6: #{_forward_impl.1} parent=1 // pred_check
      _
    $region7: #{_forward_impl.1} parent=1 // pred_check_branch
      %16 = sbr.rel (0) target = $region9
    $region8: #{_forward_impl.1} parent=1 // pred_region
      %s18 = ssub.s32 6272, 6272
      %19 = vsyncadd [#allocation3], %s18
      %s20 = sshll.u32 [#allocation2], 4
      %s21 = int_to_ptr.vmem [resolvable:$true] %s20
      %26 = dma.hbm_to_vmem [thread:$0]  %s1, 6272, %s21, [#allocation3], 64, 64, 4
    $region9: #{_forward_impl.1} parent=1 // pred_fallthru
      _
    // Predicated region
    $region10: #{_forward_impl.1} parent=1 // pred_check
      _
    $region11: #{_forward_impl.1} parent=1 // pred_check_branch
      %28 = sbr.rel (0) target = $region13
    $region12: #{_forward_impl.1} parent=1 // pred_region
      _
    $region13: #{_forward_impl.1} parent=1 // pred_fallthru
      _
    // Predicated region
    $region14: #{_forward_impl.1} parent=1 // pred_check
      _
    $region15: #{_forward_impl.1} parent=1 // pred_check_branch
      %30 = sbr.rel (0) target = $region17
    $region16: #{_forward_impl.1} parent=1 // pred_region
      _
    $region17: #{_forward_impl.1} parent=1 // pred_fallthru
      _
    // Predicated region
    $region18: #{_forward_impl.1} parent=1 // pred_check
      _
    $region19: #{_forward_impl.1} parent=1 // pred_check_branch
      %32 = sbr.rel (0) target = $region21
    $region20: #{_forward_impl.1} parent=1 // pred_region
      _
    $region21: #{_forward_impl.1} parent=1 // pred_fallthru
      _
    // Predicated region
    $region22: #{_forward_impl.1} parent=1 // pred_check
      _
    $region23: #{_forward_impl.1} parent=1 // pred_check_branch
      %34 = sbr.rel (0) target = $region25
    $region24: #{_forward_impl.1} parent=1 // pred_region
      _
    $region25: #{_forward_impl.1} parent=1 // pred_fallthru
      _
    // Predicated region
    $region26: #{_forward_impl.1} parent=1 // pred_check
      _
    $region27: #{_forward_impl.1} parent=1 // pred_check_branch
      %36 = sbr.rel (0) target = $region29
    $region28: #{_forward_impl.1} parent=1 // pred_region
      _
    $region29: #{_forward_impl.1} parent=1 // pred_fallthru
      _
    // Predicated region
    $region30: #{_forward_impl.1} parent=1 // pred_check
      _
    $region31: #{_forward_impl.1} parent=1 // pred_check_branch
      %38 = sbr.rel (0) target = $region33
    $region32: #{_forward_impl.1} parent=1 // pred_region
      %39 = dma.done [#allocation3], 6272
    $region33: #{_forward_impl.1} parent=1 // pred_fallthru
      _
    %v41 = vld [vmem:[%s0] sm:$0xff]
    %v42 = vld [vmem:[%s0 + $0x8] sm:$0xff]
    %v43 = vld [vmem:[%s0 + $0x10] sm:$0xff]
    %v44 = vld [vmem:[%s0 + $0x18] sm:$0xf]
    %v45 = vld [vmem:[%s0 + $0x1c] sm:$0xff]
    %v46 = vld [vmem:[%s0 + $0x24] sm:$0xff]
    %v47 = vld [vmem:[%s0 + $0x2c] sm:$0xff]
    %v48 = vld [vmem:[%s0 + $0x34] sm:$0xf]
    %v49 = vld [vmem:[#allocation2] sm:$0xf]
    %v50 = vld [vmem:[#allocation2 + $0x4] sm:$0xf]
    %v51 = vld [vmem:[#allocation2 + $0x8] sm:$0xf]
    %v52 = vld [vmem:[#allocation2 + $0xc] sm:$0xf]
    %v53 = vld [vmem:[#allocation2 + $0x10] sm:$0xf]
    %v54 = vld [vmem:[#allocation2 + $0x14] sm:$0xf]
    %v55 = vld [vmem:[#allocation2 + $0x18] sm:$0xf]
    %v56 = vld [vmem:[#allocation2 + $0x1c] sm:$0xf]
    %v57 = vld [vmem:[#allocation2 + $0x20] sm:$0xf]
    %v58 = vld [vmem:[#allocation2 + $0x24] sm:$0xf]
    %v59 = vld [vmem:[#allocation2 + $0x28] sm:$0xf]
    %v60 = vld [vmem:[#allocation2 + $0x2c] sm:$0xf]
    %v61 = vld [vmem:[#allocation2 + $0x30] sm:$0xf]
    %v62 = vld [vmem:[#allocation2 + $0x34] sm:$0xf]
    %v63 = vld [vmem:[#allocation2 + $0x38] sm:$0xf]
    %v64 = vld [vmem:[#allocation2 + $0x3c] sm:$0xf]
    %v65 = vld [vmem:[#allocation2 + $0x40] sm:$0xf]
    %v66 = vld [vmem:[#allocation2 + $0x44] sm:$0xf]
    %v67 = vld [vmem:[#allocation2 + $0x48] sm:$0xf]
    %v68 = vld [vmem:[#allocation2 + $0x4c] sm:$0xf]
    %v69 = vld [vmem:[#allocation2 + $0x50] sm:$0xf]
    %v70 = vld [vmem:[#allocation2 + $0x54] sm:$0xf]
    %v71 = vld [vmem:[#allocation2 + $0x58] sm:$0xf]
    %v72 = vld [vmem:[#allocation2 + $0x5c] sm:$0xf]
    %v73 = vld [vmem:[#allocation2 + $0x60] sm:$0xf]
    %v74 = vld [vmem:[#allocation2 + $0x64] sm:$0xf]
    %v75 = vld [vmem:[#allocation2 + $0x68] sm:$0xf]
    %v76 = vld [vmem:[#allocation2 + $0x6c] sm:$0xf]
    %v77 = vld [vmem:[#allocation2 + $0x70] sm:$0xf]
    %v78 = vld [vmem:[#allocation2 + $0x74] sm:$0xf]
    %v79 = vld [vmem:[#allocation2 + $0x78] sm:$0xf]
    %v80 = vld [vmem:[#allocation2 + $0x7c] sm:$0xf]
    %v81 = vld [vmem:[#allocation2 + $0x80] sm:$0xf]
    %v82 = vld [vmem:[#allocation2 + $0x84] sm:$0xf]
    %v83 = vld [vmem:[#allocation2 + $0x88] sm:$0xf]
    %v84 = vld [vmem:[#allocation2 + $0x8c] sm:$0xf]
    %v85 = vld [vmem:[#allocation2 + $0x90] sm:$0xf]
    %v86 = vld [vmem:[#allocation2 + $0x94] sm:$0xf]
    %v87 = vld [vmem:[#allocation2 + $0x98] sm:$0xf]
    %v88 = vld [vmem:[#allocation2 + $0x9c] sm:$0xf]
    %v89 = vld [vmem:[#allocation2 + $0xa0] sm:$0xf]
    %v90 = vld [vmem:[#allocation2 + $0xa4] sm:$0xf]
    %v91 = vld [vmem:[#allocation2 + $0xa8] sm:$0xf]
    %v92 = vld [vmem:[#allocation2 + $0xac] sm:$0xf]
    %v93 = vld [vmem:[#allocation2 + $0xb0] sm:$0xf]
    %v94 = vld [vmem:[#allocation2 + $0xb4] sm:$0xf]
    %v95 = vld [vmem:[#allocation2 + $0xb8] sm:$0xf]
    %v96 = vld [vmem:[#allocation2 + $0xbc] sm:$0xf]
    %v97 = vld [vmem:[#allocation2 + $0xc0] sm:$0xf]
    %v98 = vld [vmem:[#allocation2 + $0xc4] sm:$0xf]
    %v99 = vld [vmem:[#allocation2 + $0xc8] sm:$0xf]
    %v100 = vld [vmem:[#allocation2 + $0xcc] sm:$0xf]
    %v101 = vld [vmem:[#allocation2 + $0xd0] sm:$0xf]
    %v102 = vld [vmem:[#allocation2 + $0xd4] sm:$0xf]
    %v103 = vld [vmem:[#allocation2 + $0xd8] sm:$0xf]
    %v104 = vld [vmem:[#allocation2 + $0xdc] sm:$0xf]
    %v105 = vld [vmem:[#allocation2 + $0xe0] sm:$0xf]
    %v106 = vld [vmem:[#allocation2 + $0xe4] sm:$0xf]
    %v107 = vld [vmem:[#allocation2 + $0xe8] sm:$0xf]
    %v108 = vld [vmem:[#allocation2 + $0xec] sm:$0xf]
    %v109 = vld [vmem:[#allocation2 + $0xf0] sm:$0xf]
    %v110 = vld [vmem:[#allocation2 + $0xf4] sm:$0xf]
    %v111 = vld [vmem:[#allocation2 + $0xf8] sm:$0xf]
    %v112 = vld [vmem:[#allocation2 + $0xfc] sm:$0xf]
    %v113 = vld [vmem:[#allocation2 + $0x100] sm:$0xf]
    %v114 = vld [vmem:[#allocation2 + $0x104] sm:$0xf]
    %v115 = vld [vmem:[#allocation2 + $0x108] sm:$0xf]
    %v116 = vld [vmem:[#allocation2 + $0x10c] sm:$0xf]
    %v117 = vld [vmem:[#allocation2 + $0x110] sm:$0xf]
    %v118 = vld [vmem:[#allocation2 + $0x114] sm:$0xf]
    %v119 = vld [vmem:[#allocation2 + $0x118] sm:$0xf]
    %v120 = vld [vmem:[#allocation2 + $0x11c] sm:$0xf]
    %v121 = vld [vmem:[#allocation2 + $0x120] sm:$0xf]
    %v122 = vld [vmem:[#allocation2 + $0x124] sm:$0xf]
    %v123 = vld [vmem:[#allocation2 + $0x128] sm:$0xf]
    %v124 = vld [vmem:[#allocation2 + $0x12c] sm:$0xf]
    %v125 = vld [vmem:[#allocation2 + $0x130] sm:$0xf]
    %v126 = vld [vmem:[#allocation2 + $0x134] sm:$0xf]
    %v127 = vld [vmem:[#allocation2 + $0x138] sm:$0xf]
    %v128 = vld [vmem:[#allocation2 + $0x13c] sm:$0xf]
    %v129 = vld [vmem:[#allocation2 + $0x140] sm:$0xf]
    %v130 = vld [vmem:[#allocation2 + $0x144] sm:$0xf]
    %v131 = vld [vmem:[#allocation2 + $0x148] sm:$0xf]
    %v132 = vld [vmem:[#allocation2 + $0x14c] sm:$0xf]
    %v133 = vld [vmem:[#allocation2 + $0x150] sm:$0xf]
    %v134 = vld [vmem:[#allocation2 + $0x154] sm:$0xf]
    %v135 = vld [vmem:[#allocation2 + $0x158] sm:$0xf]
    %v136 = vld [vmem:[#allocation2 + $0x15c] sm:$0xf]
    %v137 = vld [vmem:[#allocation2 + $0x160] sm:$0xf]
    %v138 = vld [vmem:[#allocation2 + $0x164] sm:$0xf]
    %v139 = vld [vmem:[#allocation2 + $0x168] sm:$0xf]
    %v140 = vld [vmem:[#allocation2 + $0x16c] sm:$0xf]
    %v141 = vld [vmem:[#allocation2 + $0x170] sm:$0xf]
    %v142 = vld [vmem:[#allocation2 + $0x174] sm:$0xf]
    %v143 = vld [vmem:[#allocation2 + $0x178] sm:$0xf]
    %v144 = vld [vmem:[#allocation2 + $0x17c] sm:$0xf]
    %v145 = vld [vmem:[#allocation2 + $0x180] sm:$0xf]
    %v146 = vld [vmem:[#allocation2 + $0x184] sm:$0xf]
    %v147 = vld [vmem:[%s2] sm:$0x1]
    %v149 = vlaneseq
    %v150 = vshrl.u32 %v149, 7
    %v151 = vsub.s32 0, %v150
    %v152 = vrot.slane %v147, %v151
    %v162 = vunpack.c.l.b16 %v41
    %v163 = vunpack.c.h.b16 %v41
    %v164 = vunpack.c.l.b16 %v42
    %v165 = vunpack.c.h.b16 %v42
    %v166 = vunpack.c.l.b16 %v43
    %v167 = vunpack.c.h.b16 %v43
    %v168 = vunpack.c.l.b16 %v44
    %v169 = vunpack.c.l.b16 %v45
    %v170 = vunpack.c.h.b16 %v45
    %v171 = vunpack.c.l.b16 %v46
    %v172 = vunpack.c.h.b16 %v46
    %v173 = vunpack.c.l.b16 %v47
    %v174 = vunpack.c.h.b16 %v47
    %v175 = vunpack.c.l.b16 %v48
    %v176 = vpack.c.b16 %v169, %v162
    %v177 = vpack.c.b16 %v170, %v163
    %v178 = vpack.c.b16 %v171, %v164
    %v179 = vpack.c.b16 %v172, %v165
    %v180 = vpack.c.b16 %v173, %v166
    %v181 = vpack.c.b16 %v174, %v167
    %v182 = vpack.c.b16 %v175, %v168
    %v287 = vunpack.c.l.b16 %v49
    %v288 = vunpack.c.l.b16 %v50
    %v289 = vunpack.c.l.b16 %v51
    %v290 = vunpack.c.l.b16 %v52
    %v291 = vunpack.c.l.b16 %v53
    %v292 = vunpack.c.l.b16 %v54
    %v293 = vunpack.c.l.b16 %v55
    %v294 = vunpack.c.l.b16 %v56
    %v295 = vunpack.c.l.b16 %v57
    %v296 = vunpack.c.l.b16 %v58
    %v297 = vunpack.c.l.b16 %v59
    %v298 = vunpack.c.l.b16 %v60
    %v299 = vunpack.c.l.b16 %v61
    %v300 = vunpack.c.l.b16 %v62
    %v301 = vunpack.c.l.b16 %v63
    %v302 = vunpack.c.l.b16 %v64
    %v303 = vunpack.c.l.b16 %v65
    %v304 = vunpack.c.l.b16 %v66
    %v305 = vunpack.c.l.b16 %v67
    %v306 = vunpack.c.l.b16 %v68
    %v307 = vunpack.c.l.b16 %v69
    %v308 = vunpack.c.l.b16 %v70
    %v309 = vunpack.c.l.b16 %v71
    %v310 = vunpack.c.l.b16 %v72
    %v311 = vunpack.c.l.b16 %v73
    %v312 = vunpack.c.l.b16 %v74
    %v313 = vunpack.c.l.b16 %v75
    %v314 = vunpack.c.l.b16 %v76
    %v315 = vunpack.c.l.b16 %v77
    %v316 = vunpack.c.l.b16 %v78
    %v317 = vunpack.c.l.b16 %v79
    %v318 = vunpack.c.l.b16 %v80
    %v319 = vunpack.c.l.b16 %v81
    %v320 = vunpack.c.l.b16 %v82
    %v321 = vunpack.c.l.b16 %v83
    %v322 = vunpack.c.l.b16 %v84
    %v323 = vunpack.c.l.b16 %v85
    %v324 = vunpack.c.l.b16 %v86
    %v325 = vunpack.c.l.b16 %v87
    %v326 = vunpack.c.l.b16 %v88
    %v327 = vunpack.c.l.b16 %v89
    %v328 = vunpack.c.l.b16 %v90
    %v329 = vunpack.c.l.b16 %v91
    %v330 = vunpack.c.l.b16 %v92
    %v331 = vunpack.c.l.b16 %v93
    %v332 = vunpack.c.l.b16 %v94
    %v333 = vunpack.c.l.b16 %v95
    %v334 = vunpack.c.l.b16 %v96
    %v335 = vunpack.c.l.b16 %v97
    %v336 = vunpack.c.l.b16 %v98
    %v337 = vunpack.c.l.b16 %v99
    %v338 = vunpack.c.l.b16 %v100
    %v339 = vunpack.c.l.b16 %v101
    %v340 = vunpack.c.l.b16 %v102
    %v341 = vunpack.c.l.b16 %v103
    %v342 = vunpack.c.l.b16 %v104
    %v343 = vunpack.c.l.b16 %v105
    %v344 = vunpack.c.l.b16 %v106
    %v345 = vunpack.c.l.b16 %v107
    %v346 = vunpack.c.l.b16 %v108
    %v347 = vunpack.c.l.b16 %v109
    %v348 = vunpack.c.l.b16 %v110
    %v349 = vunpack.c.l.b16 %v111
    %v350 = vunpack.c.l.b16 %v112
    %v351 = vunpack.c.l.b16 %v113
    %v352 = vunpack.c.l.b16 %v114
    %v353 = vunpack.c.l.b16 %v115
    %v354 = vunpack.c.l.b16 %v116
    %v355 = vunpack.c.l.b16 %v117
    %v356 = vunpack.c.l.b16 %v118
    %v357 = vunpack.c.l.b16 %v119
    %v358 = vunpack.c.l.b16 %v120
    %v359 = vunpack.c.l.b16 %v121
    %v360 = vunpack.c.l.b16 %v122
    %v361 = vunpack.c.l.b16 %v123
    %v362 = vunpack.c.l.b16 %v124
    %v363 = vunpack.c.l.b16 %v125
    %v364 = vunpack.c.l.b16 %v126
    %v365 = vunpack.c.l.b16 %v127
    %v366 = vunpack.c.l.b16 %v128
    %v367 = vunpack.c.l.b16 %v129
    %v368 = vunpack.c.l.b16 %v130
    %v369 = vunpack.c.l.b16 %v131
    %v370 = vunpack.c.l.b16 %v132
    %v371 = vunpack.c.l.b16 %v133
    %v372 = vunpack.c.l.b16 %v134
    %v373 = vunpack.c.l.b16 %v135
    %v374 = vunpack.c.l.b16 %v136
    %v375 = vunpack.c.l.b16 %v137
    %v376 = vunpack.c.l.b16 %v138
    %v377 = vunpack.c.l.b16 %v139
    %v378 = vunpack.c.l.b16 %v140
    %v379 = vunpack.c.l.b16 %v141
    %v380 = vunpack.c.l.b16 %v142
    %v381 = vunpack.c.l.b16 %v143
    %v382 = vunpack.c.l.b16 %v144
    %v383 = vunpack.c.l.b16 %v145
    %v384 = vunpack.c.l.b16 %v146
    %v385 = vpack.c.b16 %v288, %v287
    %v386 = vpack.c.b16 %v290, %v289
    %v387 = vpack.c.b16 %v292, %v291
    %v388 = vpack.c.b16 %v294, %v293
    %v389 = vpack.c.b16 %v296, %v295
    %v390 = vpack.c.b16 %v298, %v297
    %v391 = vpack.c.b16 %v300, %v299
    %v392 = vpack.c.b16 %v302, %v301
    %v393 = vpack.c.b16 %v304, %v303
    %v394 = vpack.c.b16 %v306, %v305
    %v395 = vpack.c.b16 %v308, %v307
    %v396 = vpack.c.b16 %v310, %v309
    %v397 = vpack.c.b16 %v312, %v311
    %v398 = vpack.c.b16 %v314, %v313
    %v399 = vpack.c.b16 %v316, %v315
    %v400 = vpack.c.b16 %v318, %v317
    %v401 = vpack.c.b16 %v320, %v319
    %v402 = vpack.c.b16 %v322, %v321
    %v403 = vpack.c.b16 %v324, %v323
    %v404 = vpack.c.b16 %v326, %v325
    %v405 = vpack.c.b16 %v328, %v327
    %v406 = vpack.c.b16 %v330, %v329
    %v407 = vpack.c.b16 %v332, %v331
    %v408 = vpack.c.b16 %v334, %v333
    %v409 = vpack.c.b16 %v336, %v335
    %v410 = vpack.c.b16 %v338, %v337
    %v411 = vpack.c.b16 %v340, %v339
    %v412 = vpack.c.b16 %v342, %v341
    %v413 = vpack.c.b16 %v344, %v343
    %v414 = vpack.c.b16 %v346, %v345
    %v415 = vpack.c.b16 %v348, %v347
    %v416 = vpack.c.b16 %v350, %v349
    %v417 = vpack.c.b16 %v352, %v351
    %v418 = vpack.c.b16 %v354, %v353
    %v419 = vpack.c.b16 %v356, %v355
    %v420 = vpack.c.b16 %v358, %v357
    %v421 = vpack.c.b16 %v360, %v359
    %v422 = vpack.c.b16 %v362, %v361
    %v423 = vpack.c.b16 %v364, %v363
    %v424 = vpack.c.b16 %v366, %v365
    %v425 = vpack.c.b16 %v368, %v367
    %v426 = vpack.c.b16 %v370, %v369
    %v427 = vpack.c.b16 %v372, %v371
    %v428 = vpack.c.b16 %v374, %v373
    %v429 = vpack.c.b16 %v376, %v375
    %v430 = vpack.c.b16 %v378, %v377
    %v431 = vpack.c.b16 %v380, %v379
    %v432 = vpack.c.b16 %v382, %v381
    %v433 = vpack.c.b16 %v384, %v383
    %vm483 = vcmask 130048
    %v485 = vsel %vm483, %v182, 0
    %487 = vmatprep.subr.bf16.mxu0 0
    %488 = vmatpush1.bf16.msra.mxu0 %v392
    %489 = vmatprep.subr.bf16.mxu0 0
    %490 = vmatpush1.bf16.msra.mxu0 %v391
    %491 = vmatprep.subr.bf16.mxu0 0
    %492 = vmatpush1.bf16.msra.mxu0 %v390
    %493 = vmatprep.subr.bf16.mxu0 0
    %494 = vmatpush1.bf16.msra.mxu0 %v389
    %495 = vmatprep.subr.bf16.mxu0 0
    %496 = vmatpush1.bf16.msra.mxu0 %v388
    %497 = vmatprep.subr.bf16.mxu0 0
    %498 = vmatpush1.bf16.msra.mxu0 %v387
    %499 = vmatprep.subr.bf16.mxu0 0
    %500 = vmatpush1.bf16.msra.mxu0 %v386
    %501 = vmatprep.subr.bf16.mxu0 0
    %502 = vmatpush1.bf16.msra.mxu0 %v385
    %503 = vmatprep.subr.bf16.mxu0 0
    %504 = vmatpush2.bf16.msra.mxu0 %v400
    %505 = vmatprep.subr.bf16.mxu0 0
    %506 = vmatpush2.bf16.msra.mxu0 %v399
    %507 = vmatprep.subr.bf16.mxu0 0
    %508 = vmatpush2.bf16.msra.mxu0 %v398
    %509 = vmatprep.subr.bf16.mxu0 0
    %510 = vmatpush2.bf16.msra.mxu0 %v397
    %511 = vmatprep.subr.bf16.mxu0 0
    %512 = vmatpush2.bf16.msra.mxu0 %v396
    %513 = vmatprep.subr.bf16.mxu0 0
    %514 = vmatpush2.bf16.msra.mxu0 %v395
    %515 = vmatprep.subr.bf16.mxu0 0
    %516 = vmatpush2.bf16.msra.mxu0 %v394
    %517 = vmatprep.subr.bf16.mxu0 0
    %518 = vmatpush2.bf16.msra.mxu0 %v393
    %519 = vmatprep.mubr.bf16.mxu0 %v177
    %520 = vmatmul.mubr.bf16.gmra.mxu0 %v176
    %v521 = vpop.f32.mrf.mxu0
    %v522 = vadd.f32 %v152, %v521
    %v523 = vpop.f32.mrf.mxu0
    %v524 = vpop.f32.mrf.mxu0
    %v525 = vadd.f32 %v152, %v524
    %v526 = vpop.f32.mrf.mxu0
    %527 = vdwg.mxu0
    %528 = vmatprep.subr.bf16.mxu0 0
    %529 = vmatpush1.bf16.msra.mxu0 %v408
    %530 = vmatprep.subr.bf16.mxu0 0
    %531 = vmatpush1.bf16.msra.mxu0 %v407
    %532 = vmatprep.subr.bf16.mxu0 0
    %533 = vmatpush1.bf16.msra.mxu0 %v406
    %534 = vmatprep.subr.bf16.mxu0 0
    %535 = vmatpush1.bf16.msra.mxu0 %v405
    %536 = vmatprep.subr.bf16.mxu0 0
    %537 = vmatpush1.bf16.msra.mxu0 %v404
    %538 = vmatprep.subr.bf16.mxu0 0
    %539 = vmatpush1.bf16.msra.mxu0 %v403
    %540 = vmatprep.subr.bf16.mxu0 0
    %541 = vmatpush1.bf16.msra.mxu0 %v402
    %542 = vmatprep.subr.bf16.mxu0 0
    %543 = vmatpush1.bf16.msra.mxu0 %v401
    %544 = vmatprep.subr.bf16.mxu0 0
    %545 = vmatpush2.bf16.msra.mxu0 %v416
    %546 = vmatprep.subr.bf16.mxu0 0
    %547 = vmatpush2.bf16.msra.mxu0 %v415
    %548 = vmatprep.subr.bf16.mxu0 0
    %549 = vmatpush2.bf16.msra.mxu0 %v414
    %550 = vmatprep.subr.bf16.mxu0 0
    %551 = vmatpush2.bf16.msra.mxu0 %v413
    %552 = vmatprep.subr.bf16.mxu0 0
    %553 = vmatpush2.bf16.msra.mxu0 %v412
    %554 = vmatprep.subr.bf16.mxu0 0
    %555 = vmatpush2.bf16.msra.mxu0 %v411
    %556 = vmatprep.subr.bf16.mxu0 0
    %557 = vmatpush2.bf16.msra.mxu0 %v410
    %558 = vmatprep.subr.bf16.mxu0 0
    %559 = vmatpush2.bf16.msra.mxu0 %v409
    %560 = vmatprep.mubr.bf16.mxu0 %v179
    %561 = vmatmul.mubr.bf16.gmra.mxu0 %v178
    %v562 = vpop.f32.mrf.mxu0
    %v563 = vadd.f32 %v522, %v562
    %v564 = vpop.f32.mrf.mxu0
    %v565 = vpop.f32.mrf.mxu0
    %v566 = vadd.f32 %v525, %v565
    %v567 = vpop.f32.mrf.mxu0
    %568 = vdwg.mxu0
    %569 = vmatprep.subr.bf16.mxu0 0
    %570 = vmatpush1.bf16.msra.mxu0 %v424
    %571 = vmatprep.subr.bf16.mxu0 0
    %572 = vmatpush1.bf16.msra.mxu0 %v423
    %573 = vmatprep.subr.bf16.mxu0 0
    %574 = vmatpush1.bf16.msra.mxu0 %v422
    %575 = vmatprep.subr.bf16.mxu0 0
    %576 = vmatpush1.bf16.msra.mxu0 %v421
    %577 = vmatprep.subr.bf16.mxu0 0
    %578 = vmatpush1.bf16.msra.mxu0 %v420
    %579 = vmatprep.subr.bf16.mxu0 0
    %580 = vmatpush1.bf16.msra.mxu0 %v419
    %581 = vmatprep.subr.bf16.mxu0 0
    %582 = vmatpush1.bf16.msra.mxu0 %v418
    %583 = vmatprep.subr.bf16.mxu0 0
    %584 = vmatpush1.bf16.msra.mxu0 %v417
    %585 = vmatprep.subr.bf16.mxu0 0
    %586 = vmatpush2.bf16.msra.mxu0 %v432
    %587 = vmatprep.subr.bf16.mxu0 0
    %588 = vmatpush2.bf16.msra.mxu0 %v431
    %589 = vmatprep.subr.bf16.mxu0 0
    %590 = vmatpush2.bf16.msra.mxu0 %v430
    %591 = vmatprep.subr.bf16.mxu0 0
    %592 = vmatpush2.bf16.msra.mxu0 %v429
    %593 = vmatprep.subr.bf16.mxu0 0
    %594 = vmatpush2.bf16.msra.mxu0 %v428
    %595 = vmatprep.subr.bf16.mxu0 0
    %596 = vmatpush2.bf16.msra.mxu0 %v427
    %597 = vmatprep.subr.bf16.mxu0 0
    %598 = vmatpush2.bf16.msra.mxu0 %v426
    %599 = vmatprep.subr.bf16.mxu0 0
    %600 = vmatpush2.bf16.msra.mxu0 %v425
    %601 = vmatprep.mubr.bf16.mxu0 %v181
    %602 = vmatmul.mubr.bf16.gmra.mxu0 %v180
    %v603 = vpop.f32.mrf.mxu0
    %v604 = vadd.f32 %v563, %v603
    %v605 = vpop.f32.mrf.mxu0
    %v606 = vpop.f32.mrf.mxu0
    %v607 = vadd.f32 %v566, %v606
    %v608 = vpop.f32.mrf.mxu0
    %609 = vdwg.mxu0
    %610 = vmatprep.subr.bf16.mxu0 0
    %611 = vmatpush1.bf16.msra.mxu0 0
    %612 = vmatprep.subr.bf16.mxu0 0
    %613 = vmatpush1.bf16.msra.mxu0 0
    %614 = vmatprep.subr.bf16.mxu0 0
    %615 = vmatpush1.bf16.msra.mxu0 0
    %616 = vmatprep.subr.bf16.mxu0 0
    %617 = vmatpush1.bf16.msra.mxu0 0
    %618 = vmatprep.subr.bf16.mxu0 0
    %619 = vmatpush1.bf16.msra.mxu0 0
    %620 = vmatprep.subr.bf16.mxu0 0
    %621 = vmatpush1.bf16.msra.mxu0 0
    %622 = vmatprep.subr.bf16.mxu0 0
    %623 = vmatpush1.bf16.msra.mxu0 0
    %624 = vmatprep.subr.bf16.mxu0 0
    %625 = vmatpush1.bf16.msra.mxu0 %v433
    %626 = vmatprep.subr.bf16.mxu0 0
    %627 = vmatpush2.bf16.msra.mxu0 0
    %628 = vmatprep.subr.bf16.mxu0 0
    %629 = vmatpush2.bf16.msra.mxu0 0
    %630 = vmatprep.subr.bf16.mxu0 0
    %631 = vmatpush2.bf16.msra.mxu0 0
    %632 = vmatprep.subr.bf16.mxu0 0
    %633 = vmatpush2.bf16.msra.mxu0 0
    %634 = vmatprep.subr.bf16.mxu0 0
    %635 = vmatpush2.bf16.msra.mxu0 0
    %636 = vmatprep.subr.bf16.mxu0 0
    %637 = vmatpush2.bf16.msra.mxu0 0
    %638 = vmatprep.subr.bf16.mxu0 0
    %639 = vmatpush2.bf16.msra.mxu0 0
    %640 = vmatprep.subr.bf16.mxu0 0
    %641 = vmatpush2.bf16.msra.mxu0 0
    %642 = vmatprep.mubr.bf16.mxu0 0
    %643 = vmatmul.mubr.bf16.gmra.mxu0 %v485
    %v644 = vpop.f32.mrf.mxu0
    %v645 = vadd.f32 %v604, %v644
    %v646 = vpop.f32.mrf.mxu0
    %v647 = vpop.f32.mrf.mxu0
    %v648 = vadd.f32 %v607, %v647
    %v649 = vpop.f32.mrf.mxu0
    %650 = vdwg.mxu0
    %v651 = vmax.f32 %v645, 0.0
    %v652 = vmax.f32 %v648, 0.0
    %v653 = vpack.c.bf16 %v652, %v651
    %v654 = vld [vmem:[%s3] sm:$0xf]
    %v655 = vld [vmem:[%s3 + $0x4] sm:$0xf]
    %v656 = vld [vmem:[%s3 + $0x8] sm:$0xf]
    %v657 = vld [vmem:[%s3 + $0xc] sm:$0xf]
    %v658 = vld [vmem:[%s3 + $0x10] sm:$0xf]
    %v659 = vld [vmem:[%s3 + $0x14] sm:$0xf]
    %v660 = vld [vmem:[%s3 + $0x18] sm:$0xf]
    %v661 = vld [vmem:[%s3 + $0x1c] sm:$0xf]
    %v662 = vld [vmem:[%s3 + $0x20] sm:$0xf]
    %v663 = vld [vmem:[%s3 + $0x24] sm:$0xf]
    %v664 = vld [vmem:[%s3 + $0x28] sm:$0xf]
    %v665 = vld [vmem:[%s3 + $0x2c] sm:$0xf]
    %v666 = vld [vmem:[%s3 + $0x30] sm:$0xf]
    %v667 = vld [vmem:[%s3 + $0x34] sm:$0xf]
    %v668 = vld [vmem:[%s3 + $0x38] sm:$0xf]
    %v669 = vld [vmem:[%s3 + $0x3c] sm:$0xf]
    %v670 = vld [vmem:[%s4] sm:$0x1]
    %v672 = vlaneseq
    %v673 = vshrl.u32 %v672, 7
    %v674 = vsub.s32 0, %v673
    %v675 = vrot.slane %v670, %v674
    %v693 = vunpack.c.l.b16 %v654
    %v694 = vunpack.c.l.b16 %v655
    %v695 = vunpack.c.l.b16 %v656
    %v696 = vunpack.c.l.b16 %v657
    %v697 = vunpack.c.l.b16 %v658
    %v698 = vunpack.c.l.b16 %v659
    %v699 = vunpack.c.l.b16 %v660
    %v700 = vunpack.c.l.b16 %v661
    %v701 = vunpack.c.l.b16 %v662
    %v702 = vunpack.c.l.b16 %v663
    %v703 = vunpack.c.l.b16 %v664
    %v704 = vunpack.c.l.b16 %v665
    %v705 = vunpack.c.l.b16 %v666
    %v706 = vunpack.c.l.b16 %v667
    %v707 = vunpack.c.l.b16 %v668
    %v708 = vunpack.c.l.b16 %v669
    %v709 = vpack.c.b16 %v694, %v693
    %v710 = vpack.c.b16 %v696, %v695
    %v711 = vpack.c.b16 %v698, %v697
    %v712 = vpack.c.b16 %v700, %v699
    %v713 = vpack.c.b16 %v702, %v701
    %v714 = vpack.c.b16 %v704, %v703
    %v715 = vpack.c.b16 %v706, %v705
    %v716 = vpack.c.b16 %v708, %v707
    %725 = vmatprep.subr.bf16.mxu0 0
    %726 = vmatpush1.bf16.msra.mxu0 %v716
    %727 = vmatprep.subr.bf16.mxu0 0
    %728 = vmatpush1.bf16.msra.mxu0 %v715
    %729 = vmatprep.subr.bf16.mxu0 0
    %730 = vmatpush1.bf16.msra.mxu0 %v714
    %731 = vmatprep.subr.bf16.mxu0 0
    %732 = vmatpush1.bf16.msra.mxu0 %v713
    %733 = vmatprep.subr.bf16.mxu0 0
    %734 = vmatpush1.bf16.msra.mxu0 %v712
    %735 = vmatprep.subr.bf16.mxu0 0
    %736 = vmatpush1.bf16.msra.mxu0 %v711
    %737 = vmatprep.subr.bf16.mxu0 0
    %738 = vmatpush1.bf16.msra.mxu0 %v710
    %739 = vmatprep.subr.bf16.mxu0 0
    %740 = vmatpush1.bf16.msra.mxu0 %v709
    %741 = vmatprep.subr.bf16.mxu0 0
    %742 = vmatpush2.bf16.msra.mxu0 0
    %743 = vmatprep.subr.bf16.mxu0 0
    %744 = vmatpush2.bf16.msra.mxu0 0
    %745 = vmatprep.subr.bf16.mxu0 0
    %746 = vmatpush2.bf16.msra.mxu0 0
    %747 = vmatprep.subr.bf16.mxu0 0
    %748 = vmatpush2.bf16.msra.mxu0 0
    %749 = vmatprep.subr.bf16.mxu0 0
    %750 = vmatpush2.bf16.msra.mxu0 0
    %751 = vmatprep.subr.bf16.mxu0 0
    %752 = vmatpush2.bf16.msra.mxu0 0
    %753 = vmatprep.subr.bf16.mxu0 0
    %754 = vmatpush2.bf16.msra.mxu0 0
    %755 = vmatprep.subr.bf16.mxu0 0
    %756 = vmatpush2.bf16.msra.mxu0 0
    %757 = vmatprep.mubr.bf16.mxu0 0
    %758 = vmatmul.mubr.bf16.gmra.mxu0 %v653
    %v759 = vpop.f32.mrf.mxu0
    %v760 = vadd.f32 %v675, %v759
    %v761 = vpop.f32.mrf.mxu0
    %v762 = vpop.f32.mrf.mxu0
    %v763 = vadd.f32 %v675, %v762
    %v764 = vpop.f32.mrf.mxu0
    %765 = vdwg.mxu0
    %v766 = vmax.f32 %v760, 0.0
    %v767 = vmax.f32 %v763, 0.0
    %v768 = vpack.c.bf16 %v767, %v766
    %v769 = vld [vmem:[%s5] sm:$0xf]
    %v770 = vld [vmem:[%s5 + $0x4] sm:$0xf]
    %v771 = vld [vmem:[%s5 + $0x8] sm:$0xf]
    %v772 = vld [vmem:[%s5 + $0xc] sm:$0xf]
    %v773 = vld [vmem:[%s5 + $0x10] sm:$0xf]
    %v774 = vld [vmem:[%s5 + $0x14] sm:$0xf]
    %v775 = vld [vmem:[%s5 + $0x18] sm:$0xf]
    %v776 = vld [vmem:[%s5 + $0x1c] sm:$0xf]
    %v777 = vld [vmem:[%s5 + $0x20] sm:$0xf]
    %v778 = vld [vmem:[%s5 + $0x24] sm:$0xf]
    %v779 = vld [vmem:[%s5 + $0x28] sm:$0xf]
    %v780 = vld [vmem:[%s5 + $0x2c] sm:$0xf]
    %v781 = vld [vmem:[%s5 + $0x30] sm:$0xf]
    %v782 = vld [vmem:[%s5 + $0x34] sm:$0xf]
    %v783 = vld [vmem:[%s5 + $0x38] sm:$0xf]
    %v784 = vld [vmem:[%s5 + $0x3c] sm:$0xf]
    %v785 = vld [vmem:[%s6] sm:$0x1]
    %v787 = vlaneseq
    %v788 = vshrl.u32 %v787, 7
    %v789 = vsub.s32 0, %v788
    %v790 = vrot.slane %v785, %v789
    %v808 = vunpack.c.l.b16 %v769
    %v809 = vunpack.c.l.b16 %v770
    %v810 = vunpack.c.l.b16 %v771
    %v811 = vunpack.c.l.b16 %v772
    %v812 = vunpack.c.l.b16 %v773
    %v813 = vunpack.c.l.b16 %v774
    %v814 = vunpack.c.l.b16 %v775
    %v815 = vunpack.c.l.b16 %v776
    %v816 = vunpack.c.l.b16 %v777
    %v817 = vunpack.c.l.b16 %v778
    %v818 = vunpack.c.l.b16 %v779
    %v819 = vunpack.c.l.b16 %v780
    %v820 = vunpack.c.l.b16 %v781
    %v821 = vunpack.c.l.b16 %v782
    %v822 = vunpack.c.l.b16 %v783
    %v823 = vunpack.c.l.b16 %v784
    %v824 = vpack.c.b16 %v809, %v808
    %v825 = vpack.c.b16 %v811, %v810
    %v826 = vpack.c.b16 %v813, %v812
    %v827 = vpack.c.b16 %v815, %v814
    %v828 = vpack.c.b16 %v817, %v816
    %v829 = vpack.c.b16 %v819, %v818
    %v830 = vpack.c.b16 %v821, %v820
    %v831 = vpack.c.b16 %v823, %v822
    %840 = vmatprep.subr.bf16.mxu0 0
    %841 = vmatpush1.bf16.msra.mxu0 %v831
    %842 = vmatprep.subr.bf16.mxu0 0
    %843 = vmatpush1.bf16.msra.mxu0 %v830
    %844 = vmatprep.subr.bf16.mxu0 0
    %845 = vmatpush1.bf16.msra.mxu0 %v829
    %846 = vmatprep.subr.bf16.mxu0 0
    %847 = vmatpush1.bf16.msra.mxu0 %v828
    %848 = vmatprep.subr.bf16.mxu0 0
    %849 = vmatpush1.bf16.msra.mxu0 %v827
    %850 = vmatprep.subr.bf16.mxu0 0
    %851 = vmatpush1.bf16.msra.mxu0 %v826
    %852 = vmatprep.subr.bf16.mxu0 0
    %853 = vmatpush1.bf16.msra.mxu0 %v825
    %854 = vmatprep.subr.bf16.mxu0 0
    %855 = vmatpush1.bf16.msra.mxu0 %v824
    %856 = vmatprep.subr.bf16.mxu0 0
    %857 = vmatpush2.bf16.msra.mxu0 0
    %858 = vmatprep.subr.bf16.mxu0 0
    %859 = vmatpush2.bf16.msra.mxu0 0
    %860 = vmatprep.subr.bf16.mxu0 0
    %861 = vmatpush2.bf16.msra.mxu0 0
    %862 = vmatprep.subr.bf16.mxu0 0
    %863 = vmatpush2.bf16.msra.mxu0 0
    %864 = vmatprep.subr.bf16.mxu0 0
    %865 = vmatpush2.bf16.msra.mxu0 0
    %866 = vmatprep.subr.bf16.mxu0 0
    %867 = vmatpush2.bf16.msra.mxu0 0
    %868 = vmatprep.subr.bf16.mxu0 0
    %869 = vmatpush2.bf16.msra.mxu0 0
    %870 = vmatprep.subr.bf16.mxu0 0
    %871 = vmatpush2.bf16.msra.mxu0 0
    %872 = vmatprep.mubr.bf16.mxu0 0
    %873 = vmatmul.mubr.bf16.gmra.mxu0 %v768
    %v874 = vpop.f32.mrf.mxu0
    %v875 = vadd.f32 %v790, %v874
    %v876 = vpop.f32.mrf.mxu0
    %v877 = vpop.f32.mrf.mxu0
    %v878 = vadd.f32 %v790, %v877
    %v879 = vpop.f32.mrf.mxu0
    %880 = vdwg.mxu0
    %881 = vst [vmem:[%s7] sm:$0xff] %v875
    %882 = vst [vmem:[%s7 + $0x8] sm:$0xff] %v878
    // Predicated region
    $region34: #{_forward_impl.1} parent=1 // pred_check
      _
    $region35: #{_forward_impl.1} parent=1 // pred_check_branch
      %884 = sbr.rel (0) target = $region37
    $region36: #{_forward_impl.1} parent=1 // pred_region
      _
    $region37: #{_forward_impl.1} parent=1 // pred_fallthru
      _
    // Predicated region
    $region38: #{_forward_impl.1} parent=1 // pred_check
      _
    $region39: #{_forward_impl.1} parent=1 // pred_check_branch
      %886 = sbr.rel (0) target = $region41
    $region40: #{_forward_impl.1} parent=1 // pred_region
      _
    $region41: #{_forward_impl.1} parent=1 // pred_fallthru
      _
    %887 = vsyncpa [#allocation3], 1

</llo_original>
